<compile_context>
chip_gen: v6e
topology: v6e:2x2x1
jax: 0.10.0
libtpu: 0.0.40
codegen_flags: <defaults>
</compile_context>

<pallas_src>
import jax
import jax.numpy as jnp
from jax.experimental import pallas as pl
from jax.experimental.pallas import tpu as pltpu


# ----------------------------- Pallas kernel --------------------------------
def fam_gnn_fused_kernel(g1f_ref, w1f_ref, b1_ref, m_ref, w2_ref, b2_ref,
                         out_ref):
    """Fused forward of both FAM_GNNLayer_noatte layers (+ tanh after each).

    g1f_ref : [NB, K*128]   layer-1 typed gathers (M_k @ x), flattened lane-dense
    w1f_ref : [K*128, 128]  layer-1 stacked typed weights (zero-padded)
    b1_ref  : [NB, 128]     layer-1 combined bias (adst@reloh@m_bias + ntoh@h_bias)
    m_ref   : [K, NB, NB]   typed node->node operators (relations then ntypes)
    w2_ref  : [K, 128, 128] layer-2 typed weights (zero-padded)
    b2_ref  : [NB, 128]     layer-2 combined bias
    out_ref : [NB, 128]     padded output (sliced to out_dim in the wrapper)
    """
    # ---- Layer 1: typed gathers were precomputed in the wrapper -> one GEMM.
    h = jnp.tanh(
        b1_ref[...]
        + jnp.dot(g1f_ref[...], w1f_ref[...],
                  preferred_element_type=jnp.float32))          # [NB, 128] on-chip

    # ---- Layer 2: per-type node->node gather + typed GEMM, accumulated.
    num_types = m_ref.shape[0]
    acc = b2_ref[...]
    for k in range(num_types):                                  # unrolled, K = R+T
        gathered = jnp.dot(m_ref[k], h,
                           preferred_element_type=jnp.float32)  # [NB, 128]
        acc = acc + jnp.dot(gathered, w2_ref[k],
                            preferred_element_type=jnp.float32)
    out_ref[...] = jnp.tanh(acc)


# ------------------------------ wrapper --------------------------------------
_DP = 128  # lane-dense padded width for input_dim / h_dim / out_dim


@jax.jit
def fam_gnn_noatte(feat, src, dst, etypes, ntypes, params1, params2):
    """feat: [N, B, input_dim] (3-D branch of the PyTorch forward)."""
    w1, mb1, lw1, hb1 = params1
    w2, mb2, lw2, hb2 = params2
    n, b, din = feat.shape
    nb = n * b
    num_rels = w1.shape[0]
    num_ntypes = lw1.shape[0]
    h_dim = w1.shape[2]
    out_dim = w2.shape[2]
    ktypes = num_rels + num_ntypes
    hp = jax.lax.Precision.HIGHEST

    # ---- dense one-hot gather / scatter / type matrices on flattened rows ----
    b_idx = jnp.arange(b)
    src_rows = (src[:, None] * b + b_idx[None, :]).reshape(-1)        # [EB]
    dst_rows = (dst[:, None] * b + b_idx[None, :]).reshape(-1)        # [EB]
    gsrc = jax.nn.one_hot(src_rows, nb, dtype=jnp.float32)            # [EB, NB]
    adst = jax.nn.one_hot(dst_rows, nb, dtype=jnp.float32).T          # [NB, EB]
    reloh = jnp.repeat(jax.nn.one_hot(etypes, num_rels, dtype=jnp.float32),
                       b, axis=0)                                     # [EB, R]
    ntoh = jnp.repeat(jax.nn.one_hot(ntypes, num_ntypes, dtype=jnp.float32),
                      b, axis=0)                                      # [NB, T]

    # ---- fold gather + relation mask + scatter-sum into node->node operators -
    rel_ops = jnp.einsum('ne,er,em->rnm', adst, reloh, gsrc,
                         precision=hp)                                # [R, NB, NB]
    loop_ops = jnp.einsum('nt,nm->tnm', ntoh,
                          jnp.eye(nb, dtype=jnp.float32))             # [T, NB, NB]
    m_ops = jnp.concatenate([rel_ops, loop_ops], axis=0)              # [K, NB, NB]

    # ---- zero-pad feature dims to 128 lanes; stack per-type weights ----------
    def pad_w(w, rows, cols):
        return jnp.pad(w, ((0, 0), (0, _DP - rows), (0, _DP - cols)))

    w1s = jnp.concatenate([pad_w(w1, din, h_dim),
                           pad_w(lw1, din, h_dim)], axis=0)           # [K, DP, DP]
    w2s = jnp.concatenate([pad_w(w2, h_dim, out_dim),
                           pad_w(lw2, h_dim, out_dim)], axis=0)       # [K, DP, DP]

    # ---- per-layer combined bias: adst @ reloh @ m_bias + ntoh @ h_bias ------
    def layer_bias(mb, hb, dout):
        bias = (jnp.dot(adst, jnp.dot(reloh, mb, precision=hp), precision=hp)
                + jnp.dot(ntoh, hb.reshape(num_ntypes, dout), precision=hp))
        return jnp.pad(bias, ((0, 0), (0, _DP - dout)))               # [NB, DP]

    b1 = layer_bias(mb1, hb1, h_dim)
    b2 = layer_bias(mb2, hb2, out_dim)

    # ---- layer-1 typed gathers precomputed here (plain XLA) and flattened ----
    x = jnp.pad(feat.reshape(nb, din).astype(jnp.float32),
                ((0, 0), (0, _DP - din)))                             # [NB, DP]
    g1 = jnp.einsum('knm,md->knd', m_ops, x, precision=hp)            # [K, NB, DP]
    g1_flat = jnp.transpose(g1, (1, 0, 2)).reshape(nb, ktypes * _DP)  # [NB, K*DP]
    w1_flat = w1s.reshape(ktypes * _DP, _DP)                          # [K*DP, DP]

    args = (g1_flat, w1_flat, b1, m_ops, w2s, b2)

    # No grid: whole-problem, full-array VMEM blocks (tiny sizes, one invocation).
    out = pl.pallas_call(
        fam_gnn_fused_kernel,
        in_specs=[pl.BlockSpec(memory_space=pltpu.MemorySpace.VMEM)
                  for _ in args],
        out_specs=pl.BlockSpec(memory_space=pltpu.MemorySpace.VMEM),
        out_shape=jax.ShapeDtypeStruct((nb, _DP), jnp.float32),
    )(*args)

    return out[:, :out_dim].reshape(n, b, out_dim)


# ---------------------------- pure-JAX reference -----------------------------
def _ref_layer(feat, src, dst, etypes, ntypes, w, mb, lw, hb3):
    n, b, _ = feat.shape
    d_out = w.shape[2]
    msg = jnp.einsum('ebd,edo->ebo', feat[src], w[etypes],
                     precision=jax.lax.Precision.HIGHEST) + mb[etypes][:, None, :]
    agg = jnp.zeros((n, b, d_out), jnp.float32).at[dst].add(msg)
    loopv = jnp.einsum('nbd,ndo->nbo', feat, lw[ntypes],
                       precision=jax.lax.Precision.HIGHEST) + hb3[ntypes]
    return agg + loopv


def _ref_model(feat, src, dst, etypes, ntypes, p1, p2):
    x = jnp.tanh(_ref_layer(feat, src, dst, etypes, ntypes, *p1))
    x = jnp.tanh(_ref_layer(x, src, dst, etypes, ntypes, *p2))
    return x


# ---------------------------- parameter init ---------------------------------
def xavier_uniform(key, shape, gain):
    # torch.nn.init.xavier_uniform_ semantics for a 3-D tensor [R, Din, Dout]:
    # fan_in = size(1)*prod(shape[2:]), fan_out = size(0)*prod(shape[2:]).
    receptive = 1
    for s in shape[2:]:
        receptive *= s
    fan_in = shape[1] * receptive
    fan_out = shape[0] * receptive
    bound = gain * (6.0 / (fan_in + fan_out)) ** 0.5
    return jax.random.uniform(key, shape, jnp.float32, -bound, bound)


# --------------------------------- main ---------------------------------------
if __name__ == "__main__":
    key = jax.random.PRNGKey(0)
    keys = jax.random.split(key, 9)

    # Small graph: N nodes, E edges, batch B per node.
    N, B, E = 8, 2, 12
    input_dim, h_dim, out_dim = 16, 32, 16
    num_rels, num_ntypes = 3, 2

    feat = jax.random.normal(keys[0], (N, B, input_dim), jnp.float32)
    src = jax.random.randint(keys[1], (E,), 0, N)
    dst = jax.random.randint(keys[2], (E,), 0, N)
    etypes = jax.random.randint(keys[3], (E,), 0, num_rels)
    ntypes = jax.random.randint(keys[4], (N,), 0, num_ntypes)

    gain = 5.0 / 3.0  # nn.init.calculate_gain('tanh')
    # layer 1 params (weights xavier_uniform, biases zero — matches __init__)
    w1 = xavier_uniform(keys[5], (num_rels, input_dim, h_dim), gain)
    lw1 = xavier_uniform(keys[6], (num_ntypes, input_dim, h_dim), gain)
    mb1 = jnp.zeros((num_rels, h_dim), jnp.float32)
    hb1 = jnp.zeros((num_ntypes, 1, h_dim), jnp.float32)
    # layer 2 params
    w2 = xavier_uniform(keys[7], (num_rels, h_dim, out_dim), gain)
    lw2 = xavier_uniform(keys[8], (num_ntypes, h_dim, out_dim), gain)
    mb2 = jnp.zeros((num_rels, out_dim), jnp.float32)
    hb2 = jnp.zeros((num_ntypes, 1, out_dim), jnp.float32)

    params1 = (w1, mb1, lw1, hb1)
    params2 = (w2, mb2, lw2, hb2)

    out = fam_gnn_noatte(feat, src, dst, etypes, ntypes, params1, params2)
    out = jax.block_until_ready(out)

    ref = _ref_model(feat, src, dst, etypes, ntypes, params1, params2)
    assert out.shape == (N, B, out_dim), out.shape
    max_err = float(jnp.max(jnp.abs(out - ref)))
    assert jnp.allclose(out, ref, atol=2e-2, rtol=2e-2), max_err
    print("KERNEL_OK")
</pallas_src>

<mosaic_0001>
module attributes {stable_mosaic.version = 11 : i64} {
  func.func @fam_gnn_fused_kernel(%arg0: memref<16x640xf32, #tpu.memory_space<vmem>>, %arg1: memref<640x128xf32, #tpu.memory_space<vmem>>, %arg2: memref<16x128xf32, #tpu.memory_space<vmem>>, %arg3: memref<5x16x16xf32, #tpu.memory_space<vmem>>, %arg4: memref<5x128x128xf32, #tpu.memory_space<vmem>>, %arg5: memref<16x128xf32, #tpu.memory_space<vmem>>, %arg6: memref<16x128xf32, #tpu.memory_space<vmem>>) attributes {dimension_semantics = [], scalar_prefetch = 0 : i64, scratch_operands = 0 : i64, tpu.core_type = #tpu.core_type<tc>} {
    %c0 = arith.constant 0 : index
    %c0_0 = arith.constant 0 : index
    %0 = vector.load %arg2[%c0, %c0_0] : memref<16x128xf32, #tpu.memory_space<vmem>>, vector<16x128xf32>
    %c0_1 = arith.constant 0 : index
    %c0_2 = arith.constant 0 : index
    %1 = vector.load %arg0[%c0_1, %c0_2] : memref<16x640xf32, #tpu.memory_space<vmem>>, vector<16x640xf32>
    %c0_3 = arith.constant 0 : index
    %c0_4 = arith.constant 0 : index
    %2 = vector.load %arg1[%c0_3, %c0_4] : memref<640x128xf32, #tpu.memory_space<vmem>>, vector<640x128xf32>
    %cst = arith.constant dense<0.000000e+00> : vector<16x128xf32>
    %3 = tpu.matmul %1, %2, %cst {dimension_numbers = #tpu.dot_dimension_numbers<[1], [0], [0], [1], [0, 0, 1, 1], [], []>} : vector<16x640xf32>, vector<640x128xf32>, vector<16x128xf32> -> vector<16x128xf32>
    %4 = arith.addf %0, %3 : vector<16x128xf32>
    %5 = math.tanh %4 : vector<16x128xf32>
    %c0_5 = arith.constant 0 : index
    %c0_6 = arith.constant 0 : index
    %6 = vector.load %arg5[%c0_5, %c0_6] : memref<16x128xf32, #tpu.memory_space<vmem>>, vector<16x128xf32>
    %c0_7 = arith.constant 0 : index
    %c0_8 = arith.constant 0 : index
    %c0_9 = arith.constant 0 : index
    %7 = vector.load %arg3[%c0_7, %c0_8, %c0_9] : memref<5x16x16xf32, #tpu.memory_space<vmem>>, vector<1x16x16xf32>
    %8 = vector.shape_cast %7 : vector<1x16x16xf32> to vector<16x16xf32>
    %cst_10 = arith.constant dense<0.000000e+00> : vector<16x128xf32>
    %9 = tpu.matmul %8, %5, %cst_10 {dimension_numbers = #tpu.dot_dimension_numbers<[1], [0], [0], [1], [0, 0, 1, 1], [], []>} : vector<16x16xf32>, vector<16x128xf32>, vector<16x128xf32> -> vector<16x128xf32>
    %c0_11 = arith.constant 0 : index
    %c0_12 = arith.constant 0 : index
    %c0_13 = arith.constant 0 : index
    %10 = vector.load %arg4[%c0_11, %c0_12, %c0_13] : memref<5x128x128xf32, #tpu.memory_space<vmem>>, vector<1x128x128xf32>
    %11 = vector.shape_cast %10 : vector<1x128x128xf32> to vector<128x128xf32>
    %cst_14 = arith.constant dense<0.000000e+00> : vector<16x128xf32>
    %12 = tpu.matmul %9, %11, %cst_14 {dimension_numbers = #tpu.dot_dimension_numbers<[1], [0], [0], [1], [0, 0, 1, 1], [], []>} : vector<16x128xf32>, vector<128x128xf32>, vector<16x128xf32> -> vector<16x128xf32>
    %13 = arith.addf %6, %12 : vector<16x128xf32>
    %c1 = arith.constant 1 : index
    %c0_15 = arith.constant 0 : index
    %c0_16 = arith.constant 0 : index
    %14 = vector.load %arg3[%c1, %c0_15, %c0_16] : memref<5x16x16xf32, #tpu.memory_space<vmem>>, vector<1x16x16xf32>
    %15 = vector.shape_cast %14 : vector<1x16x16xf32> to vector<16x16xf32>
    %cst_17 = arith.constant dense<0.000000e+00> : vector<16x128xf32>
    %16 = tpu.matmul %15, %5, %cst_17 {dimension_numbers = #tpu.dot_dimension_numbers<[1], [0], [0], [1], [0, 0, 1, 1], [], []>} : vector<16x16xf32>, vector<16x128xf32>, vector<16x128xf32> -> vector<16x128xf32>
    %c1_18 = arith.constant 1 : index
    %c0_19 = arith.constant 0 : index
    %c0_20 = arith.constant 0 : index
    %17 = vector.load %arg4[%c1_18, %c0_19, %c0_20] : memref<5x128x128xf32, #tpu.memory_space<vmem>>, vector<1x128x128xf32>
    %18 = vector.shape_cast %17 : vector<1x128x128xf32> to vector<128x128xf32>
    %cst_21 = arith.constant dense<0.000000e+00> : vector<16x128xf32>
    %19 = tpu.matmul %16, %18, %cst_21 {dimension_numbers = #tpu.dot_dimension_numbers<[1], [0], [0], [1], [0, 0, 1, 1], [], []>} : vector<16x128xf32>, vector<128x128xf32>, vector<16x128xf32> -> vector<16x128xf32>
    %20 = arith.addf %13, %19 : vector<16x128xf32>
    %c2 = arith.constant 2 : index
    %c0_22 = arith.constant 0 : index
    %c0_23 = arith.constant 0 : index
    %21 = vector.load %arg3[%c2, %c0_22, %c0_23] : memref<5x16x16xf32, #tpu.memory_space<vmem>>, vector<1x16x16xf32>
    %22 = vector.shape_cast %21 : vector<1x16x16xf32> to vector<16x16xf32>
    %cst_24 = arith.constant dense<0.000000e+00> : vector<16x128xf32>
    %23 = tpu.matmul %22, %5, %cst_24 {dimension_numbers = #tpu.dot_dimension_numbers<[1], [0], [0], [1], [0, 0, 1, 1], [], []>} : vector<16x16xf32>, vector<16x128xf32>, vector<16x128xf32> -> vector<16x128xf32>
    %c2_25 = arith.constant 2 : index
    %c0_26 = arith.constant 0 : index
    %c0_27 = arith.constant 0 : index
    %24 = vector.load %arg4[%c2_25, %c0_26, %c0_27] : memref<5x128x128xf32, #tpu.memory_space<vmem>>, vector<1x128x128xf32>
    %25 = vector.shape_cast %24 : vector<1x128x128xf32> to vector<128x128xf32>
    %cst_28 = arith.constant dense<0.000000e+00> : vector<16x128xf32>
    %26 = tpu.matmul %23, %25, %cst_28 {dimension_numbers = #tpu.dot_dimension_numbers<[1], [0], [0], [1], [0, 0, 1, 1], [], []>} : vector<16x128xf32>, vector<128x128xf32>, vector<16x128xf32> -> vector<16x128xf32>
    %27 = arith.addf %20, %26 : vector<16x128xf32>
    %c3 = arith.constant 3 : index
    %c0_29 = arith.constant 0 : index
    %c0_30 = arith.constant 0 : index
    %28 = vector.load %arg3[%c3, %c0_29, %c0_30] : memref<5x16x16xf32, #tpu.memory_space<vmem>>, vector<1x16x16xf32>
    %29 = vector.shape_cast %28 : vector<1x16x16xf32> to vector<16x16xf32>
    %cst_31 = arith.constant dense<0.000000e+00> : vector<16x128xf32>
    %30 = tpu.matmul %29, %5, %cst_31 {dimension_numbers = #tpu.dot_dimension_numbers<[1], [0], [0], [1], [0, 0, 1, 1], [], []>} : vector<16x16xf32>, vector<16x128xf32>, vector<16x128xf32> -> vector<16x128xf32>
    %c3_32 = arith.constant 3 : index
    %c0_33 = arith.constant 0 : index
    %c0_34 = arith.constant 0 : index
    %31 = vector.load %arg4[%c3_32, %c0_33, %c0_34] : memref<5x128x128xf32, #tpu.memory_space<vmem>>, vector<1x128x128xf32>
    %32 = vector.shape_cast %31 : vector<1x128x128xf32> to vector<128x128xf32>
    %cst_35 = arith.constant dense<0.000000e+00> : vector<16x128xf32>
    %33 = tpu.matmul %30, %32, %cst_35 {dimension_numbers = #tpu.dot_dimension_numbers<[1], [0], [0], [1], [0, 0, 1, 1], [], []>} : vector<16x128xf32>, vector<128x128xf32>, vector<16x128xf32> -> vector<16x128xf32>
    %34 = arith.addf %27, %33 : vector<16x128xf32>
    %c4 = arith.constant 4 : index
    %c0_36 = arith.constant 0 : index
    %c0_37 = arith.constant 0 : index
    %35 = vector.load %arg3[%c4, %c0_36, %c0_37] : memref<5x16x16xf32, #tpu.memory_space<vmem>>, vector<1x16x16xf32>
    %36 = vector.shape_cast %35 : vector<1x16x16xf32> to vector<16x16xf32>
    %cst_38 = arith.constant dense<0.000000e+00> : vector<16x128xf32>
    %37 = tpu.matmul %36, %5, %cst_38 {dimension_numbers = #tpu.dot_dimension_numbers<[1], [0], [0], [1], [0, 0, 1, 1], [], []>} : vector<16x16xf32>, vector<16x128xf32>, vector<16x128xf32> -> vector<16x128xf32>
    %c4_39 = arith.constant 4 : index
    %c0_40 = arith.constant 0 : index
    %c0_41 = arith.constant 0 : index
    %38 = vector.load %arg4[%c4_39, %c0_40, %c0_41] : memref<5x128x128xf32, #tpu.memory_space<vmem>>, vector<1x128x128xf32>
    %39 = vector.shape_cast %38 : vector<1x128x128xf32> to vector<128x128xf32>
    %cst_42 = arith.constant dense<0.000000e+00> : vector<16x128xf32>
    %40 = tpu.matmul %37, %39, %cst_42 {dimension_numbers = #tpu.dot_dimension_numbers<[1], [0], [0], [1], [0, 0, 1, 1], [], []>} : vector<16x128xf32>, vector<128x128xf32>, vector<16x128xf32> -> vector<16x128xf32>
    %41 = arith.addf %34, %40 : vector<16x128xf32>
    %42 = math.tanh %41 : vector<16x128xf32>
    %c0_43 = arith.constant 0 : index
    %c0_44 = arith.constant 0 : index
    %43 = vector.load %arg6[%c0_43, %c0_44] : memref<16x128xf32, #tpu.memory_space<vmem>>, vector<16x128xf32>
    tpu.vector_store %arg6[%c0_43, %c0_44], %42 {strides = array<i32>} : memref<16x128xf32, #tpu.memory_space<vmem>>, vector<16x128xf32>,
    return
  }
}

</mosaic_0001>

<llo_original>
// kernel: fam_gnn_noatte.1
$region0: #{fam_gnn_noatte.1}
  #allocation0 [shape = 'u32[]', space=smem, size = 0x4, offset = 0x4, fixed_abs, tag = 'smem constant byte address 0x4 - core index']
  #allocation1 [shape = 'u32[144,128]{1,0:T(1,128)}', space=vmem, size = 0x12000, scoped, tag = 'internal scratch']
  %s0 = inlined_call_operand.vmem [shape: f32[16,640], index: 0, kind: input, shape index: {}]
  %s1 = inlined_call_operand.vmem [shape: f32[640,128], index: 1, kind: input, shape index: {}]
  %s2 = inlined_call_operand.vmem [shape: f32[16,128], index: 2, kind: input, shape index: {}]
  %s3 = inlined_call_operand.vmem [shape: f32[5,16,16], index: 3, kind: input, shape index: {}]
  %s4 = inlined_call_operand.vmem [shape: f32[5,128,128], index: 4, kind: input, shape index: {}]
  %s5 = inlined_call_operand.vmem [shape: f32[16,128], index: 5, kind: input, shape index: {}]
  %s6 = inlined_call_operand.hbm [shape: f32[16,128], index: 6, kind: output, shape index: {}]
  %s7 = sld [smem:[#allocation0]]
  $region34: #{fam_gnn_noatte.1} parent=0
    _
  %s9 = ssub.s32 1, %s7
  %s10 = scalar_select 0, %s9, %s7
  $region1: #{fam_gnn_noatte.1} parent=0
    #allocation2 [shape = 'u8[8192]{0}', space=vmem, size = 0x2000, scoped, tag = 'output window, operand 0, single buffered']
    #allocation3 [shape = 's32[1]{0}', space=sflag, size = 0x4, scoped, tag = 'scoped memory for fam_gnn_noatte.1']
    %11 = vsyncpa [#allocation3], 0
    // Predicated region
    $region2: #{fam_gnn_noatte.1} parent=1 // pred_check
      _
    $region3: #{fam_gnn_noatte.1} parent=1 // pred_check_branch
      %13 = sbr.rel (0) target = $region5
    $region4: #{fam_gnn_noatte.1} parent=1 // pred_region
      _
    $region5: #{fam_gnn_noatte.1} parent=1 // pred_fallthru
      _
    // Predicated region
    $region6: #{fam_gnn_noatte.1} parent=1 // pred_check
      _
    $region7: #{fam_gnn_noatte.1} parent=1 // pred_check_branch
      %15 = sbr.rel (0) target = $region9
    $region8: #{fam_gnn_noatte.1} parent=1 // pred_region
      _
    $region9: #{fam_gnn_noatte.1} parent=1 // pred_fallthru
      _
    // Predicated region
    $region10: #{fam_gnn_noatte.1} parent=1 // pred_check
      _
    $region11: #{fam_gnn_noatte.1} parent=1 // pred_check_branch
      %17 = sbr.rel (0) target = $region13
    $region12: #{fam_gnn_noatte.1} parent=1 // pred_region
      _
    $region13: #{fam_gnn_noatte.1} parent=1 // pred_fallthru
      _
    // Predicated region
    $region14: #{fam_gnn_noatte.1} parent=1 // pred_check
      _
    $region15: #{fam_gnn_noatte.1} parent=1 // pred_check_branch
      %19 = sbr.rel (0) target = $region17
    $region16: #{fam_gnn_noatte.1} parent=1 // pred_region
      _
    $region17: #{fam_gnn_noatte.1} parent=1 // pred_fallthru
      _
    // Predicated region
    $region18: #{fam_gnn_noatte.1} parent=1 // pred_check
      _
    $region19: #{fam_gnn_noatte.1} parent=1 // pred_check_branch
      %21 = sbr.rel (0) target = $region21
    $region20: #{fam_gnn_noatte.1} parent=1 // pred_region
      _
    $region21: #{fam_gnn_noatte.1} parent=1 // pred_fallthru
      _
    // Predicated region
    $region22: #{fam_gnn_noatte.1} parent=1 // pred_check
      _
    $region23: #{fam_gnn_noatte.1} parent=1 // pred_check_branch
      %23 = sbr.rel (0) target = $region25
    $region24: #{fam_gnn_noatte.1} parent=1 // pred_region
      _
    $region25: #{fam_gnn_noatte.1} parent=1 // pred_fallthru
      _
    %v24 = vld [vmem:[%s2] sm:$0xff]
    %v25 = vld [vmem:[%s2 + $0x8] sm:$0xff]
    %v26 = vld [vmem:[%s0] sm:$0xff]
    %v27 = vld [vmem:[%s0 + $0x8] sm:$0xff]
    %v28 = vld [vmem:[%s0 + $0x10] sm:$0xff]
    %v29 = vld [vmem:[%s0 + $0x18] sm:$0xff]
    %v30 = vld [vmem:[%s0 + $0x20] sm:$0xff]
    %v31 = vld [vmem:[%s0 + $0x28] sm:$0xff]
    %v32 = vld [vmem:[%s0 + $0x30] sm:$0xff]
    %v33 = vld [vmem:[%s0 + $0x38] sm:$0xff]
    %v34 = vld [vmem:[%s0 + $0x40] sm:$0xff]
    %v35 = vld [vmem:[%s0 + $0x48] sm:$0xff]
    %v36 = vld [vmem:[%s1] sm:$0xff]
    %v37 = vld [vmem:[%s1 + $0x8] sm:$0xff]
    %v38 = vld [vmem:[%s1 + $0x10] sm:$0xff]
    %v39 = vld [vmem:[%s1 + $0x18] sm:$0xff]
    %v40 = vld [vmem:[%s1 + $0x20] sm:$0xff]
    %v41 = vld [vmem:[%s1 + $0x28] sm:$0xff]
    %v42 = vld [vmem:[%s1 + $0x30] sm:$0xff]
    %v43 = vld [vmem:[%s1 + $0x38] sm:$0xff]
    %v44 = vld [vmem:[%s1 + $0x40] sm:$0xff]
    %v45 = vld [vmem:[%s1 + $0x48] sm:$0xff]
    %v46 = vld [vmem:[%s1 + $0x50] sm:$0xff]
    %v47 = vld [vmem:[%s1 + $0x58] sm:$0xff]
    %v48 = vld [vmem:[%s1 + $0x60] sm:$0xff]
    %v49 = vld [vmem:[%s1 + $0x68] sm:$0xff]
    %v50 = vld [vmem:[%s1 + $0x70] sm:$0xff]
    %v51 = vld [vmem:[%s1 + $0x78] sm:$0xff]
    %v52 = vld [vmem:[%s1 + $0x80] sm:$0xff]
    %v53 = vld [vmem:[%s1 + $0x88] sm:$0xff]
    %v54 = vld [vmem:[%s1 + $0x90] sm:$0xff]
    %v55 = vld [vmem:[%s1 + $0x98] sm:$0xff]
    %v56 = vld [vmem:[%s1 + $0xa0] sm:$0xff]
    %v57 = vld [vmem:[%s1 + $0xa8] sm:$0xff]
    %v58 = vld [vmem:[%s1 + $0xb0] sm:$0xff]
    %v59 = vld [vmem:[%s1 + $0xb8] sm:$0xff]
    %v60 = vld [vmem:[%s1 + $0xc0] sm:$0xff]
    %v61 = vld [vmem:[%s1 + $0xc8] sm:$0xff]
    %v62 = vld [vmem:[%s1 + $0xd0] sm:$0xff]
    %v63 = vld [vmem:[%s1 + $0xd8] sm:$0xff]
    %v64 = vld [vmem:[%s1 + $0xe0] sm:$0xff]
    %v65 = vld [vmem:[%s1 + $0xe8] sm:$0xff]
    %v66 = vld [vmem:[%s1 + $0xf0] sm:$0xff]
    %v67 = vld [vmem:[%s1 + $0xf8] sm:$0xff]
    %v68 = vld [vmem:[%s1 + $0x100] sm:$0xff]
    %v69 = vld [vmem:[%s1 + $0x108] sm:$0xff]
    %v70 = vld [vmem:[%s1 + $0x110] sm:$0xff]
    %v71 = vld [vmem:[%s1 + $0x118] sm:$0xff]
    %v72 = vld [vmem:[%s1 + $0x120] sm:$0xff]
    %v73 = vld [vmem:[%s1 + $0x128] sm:$0xff]
    %v74 = vld [vmem:[%s1 + $0x130] sm:$0xff]
    %v75 = vld [vmem:[%s1 + $0x138] sm:$0xff]
    %v76 = vld [vmem:[%s1 + $0x140] sm:$0xff]
    %v77 = vld [vmem:[%s1 + $0x148] sm:$0xff]
    %v78 = vld [vmem:[%s1 + $0x150] sm:$0xff]
    %v79 = vld [vmem:[%s1 + $0x158] sm:$0xff]
    %v80 = vld [vmem:[%s1 + $0x160] sm:$0xff]
    %v81 = vld [vmem:[%s1 + $0x168] sm:$0xff]
    %v82 = vld [vmem:[%s1 + $0x170] sm:$0xff]
    %v83 = vld [vmem:[%s1 + $0x178] sm:$0xff]
    %v84 = vld [vmem:[%s1 + $0x180] sm:$0xff]
    %v85 = vld [vmem:[%s1 + $0x188] sm:$0xff]
    %v86 = vld [vmem:[%s1 + $0x190] sm:$0xff]
    %v87 = vld [vmem:[%s1 + $0x198] sm:$0xff]
    %v88 = vld [vmem:[%s1 + $0x1a0] sm:$0xff]
    %v89 = vld [vmem:[%s1 + $0x1a8] sm:$0xff]
    %v90 = vld [vmem:[%s1 + $0x1b0] sm:$0xff]
    %v91 = vld [vmem:[%s1 + $0x1b8] sm:$0xff]
    %v92 = vld [vmem:[%s1 + $0x1c0] sm:$0xff]
    %v93 = vld [vmem:[%s1 + $0x1c8] sm:$0xff]
    %v94 = vld [vmem:[%s1 + $0x1d0] sm:$0xff]
    %v95 = vld [vmem:[%s1 + $0x1d8] sm:$0xff]
    %v96 = vld [vmem:[%s1 + $0x1e0] sm:$0xff]
    %v97 = vld [vmem:[%s1 + $0x1e8] sm:$0xff]
    %v98 = vld [vmem:[%s1 + $0x1f0] sm:$0xff]
    %v99 = vld [vmem:[%s1 + $0x1f8] sm:$0xff]
    %v100 = vld [vmem:[%s1 + $0x200] sm:$0xff]
    %v101 = vld [vmem:[%s1 + $0x208] sm:$0xff]
    %v102 = vld [vmem:[%s1 + $0x210] sm:$0xff]
    %v103 = vld [vmem:[%s1 + $0x218] sm:$0xff]
    %v104 = vld [vmem:[%s1 + $0x220] sm:$0xff]
    %v105 = vld [vmem:[%s1 + $0x228] sm:$0xff]
    %v106 = vld [vmem:[%s1 + $0x230] sm:$0xff]
    %v107 = vld [vmem:[%s1 + $0x238] sm:$0xff]
    %v108 = vld [vmem:[%s1 + $0x240] sm:$0xff]
    %v109 = vld [vmem:[%s1 + $0x248] sm:$0xff]
    %v110 = vld [vmem:[%s1 + $0x250] sm:$0xff]
    %v111 = vld [vmem:[%s1 + $0x258] sm:$0xff]
    %v112 = vld [vmem:[%s1 + $0x260] sm:$0xff]
    %v113 = vld [vmem:[%s1 + $0x268] sm:$0xff]
    %v114 = vld [vmem:[%s1 + $0x270] sm:$0xff]
    %v115 = vld [vmem:[%s1 + $0x278] sm:$0xff]
    %116 = vmatprep.subr.mxu0 0.0
    %117 = vmatpush1.msra.mxu0 %v51
    %118 = vmatprep.subr.mxu0 0.0
    %119 = vmatpush1.msra.mxu0 %v50
    %120 = vmatprep.subr.mxu0 0.0
    %121 = vmatpush1.msra.mxu0 %v49
    %122 = vmatprep.subr.mxu0 0.0
    %123 = vmatpush1.msra.mxu0 %v48
    %124 = vmatprep.subr.mxu0 0.0
    %125 = vmatpush1.msra.mxu0 %v47
    %126 = vmatprep.subr.mxu0 0.0
    %127 = vmatpush1.msra.mxu0 %v46
    %128 = vmatprep.subr.mxu0 0.0
    %129 = vmatpush1.msra.mxu0 %v45
    %130 = vmatprep.subr.mxu0 0.0
    %131 = vmatpush1.msra.mxu0 %v44
    %132 = vmatprep.subr.mxu0 0.0
    %133 = vmatpush1.msra.mxu0 %v43
    %134 = vmatprep.subr.mxu0 0.0
    %135 = vmatpush1.msra.mxu0 %v42
    %136 = vmatprep.subr.mxu0 0.0
    %137 = vmatpush1.msra.mxu0 %v41
    %138 = vmatprep.subr.mxu0 0.0
    %139 = vmatpush1.msra.mxu0 %v40
    %140 = vmatprep.subr.mxu0 0.0
    %141 = vmatpush1.msra.mxu0 %v39
    %142 = vmatprep.subr.mxu0 0.0
    %143 = vmatpush1.msra.mxu0 %v38
    %144 = vmatprep.subr.mxu0 0.0
    %145 = vmatpush1.msra.mxu0 %v37
    %146 = vmatprep.subr.mxu0 0.0
    %147 = vmatpush1.msra.mxu0 %v36
    %148 = vmatprep.subr.mxu0 0.0
    %149 = vmatpush2.msra.mxu0 %v67
    %150 = vmatprep.subr.mxu0 0.0
    %151 = vmatpush2.msra.mxu0 %v66
    %152 = vmatprep.subr.mxu0 0.0
    %153 = vmatpush2.msra.mxu0 %v65
    %154 = vmatprep.subr.mxu0 0.0
    %155 = vmatpush2.msra.mxu0 %v64
    %156 = vmatprep.subr.mxu0 0.0
    %157 = vmatpush2.msra.mxu0 %v63
    %158 = vmatprep.subr.mxu0 0.0
    %159 = vmatpush2.msra.mxu0 %v62
    %160 = vmatprep.subr.mxu0 0.0
    %161 = vmatpush2.msra.mxu0 %v61
    %162 = vmatprep.subr.mxu0 0.0
    %163 = vmatpush2.msra.mxu0 %v60
    %164 = vmatprep.subr.mxu0 0.0
    %165 = vmatpush2.msra.mxu0 %v59
    %166 = vmatprep.subr.mxu0 0.0
    %167 = vmatpush2.msra.mxu0 %v58
    %168 = vmatprep.subr.mxu0 0.0
    %169 = vmatpush2.msra.mxu0 %v57
    %170 = vmatprep.subr.mxu0 0.0
    %171 = vmatpush2.msra.mxu0 %v56
    %172 = vmatprep.subr.mxu0 0.0
    %173 = vmatpush2.msra.mxu0 %v55
    %174 = vmatprep.subr.mxu0 0.0
    %175 = vmatpush2.msra.mxu0 %v54
    %176 = vmatprep.subr.mxu0 0.0
    %177 = vmatpush2.msra.mxu0 %v53
    %178 = vmatprep.subr.mxu0 0.0
    %179 = vmatpush2.msra.mxu0 %v52
    %180 = vmatprep.mubr.f32.mxu0 %v27
    %181 = vmatmul.mubr.f32.gmra.mxu0 %v26
    %v182 = vpop.f32.mrf.mxu0
    %v183 = vadd.f32 0.0, %v182
    %v184 = vpop.f32.mrf.mxu0
    %185 = vmatprep.mubr.f32.mxu0 %v32
    %186 = vmatmul.mubr.f32.gmra.mxu0 %v31
    %v187 = vpop.f32.mrf.mxu0
    %v188 = vadd.f32 0.0, %v187
    %v189 = vpop.f32.mrf.mxu0
    %190 = vdwg.mxu0
    %191 = vmatprep.subr.mxu0 0.0
    %192 = vmatpush1.msra.mxu0 %v83
    %193 = vmatprep.subr.mxu0 0.0
    %194 = vmatpush1.msra.mxu0 %v82
    %195 = vmatprep.subr.mxu0 0.0
    %196 = vmatpush1.msra.mxu0 %v81
    %197 = vmatprep.subr.mxu0 0.0
    %198 = vmatpush1.msra.mxu0 %v80
    %199 = vmatprep.subr.mxu0 0.0
    %200 = vmatpush1.msra.mxu0 %v79
    %201 = vmatprep.subr.mxu0 0.0
    %202 = vmatpush1.msra.mxu0 %v78
    %203 = vmatprep.subr.mxu0 0.0
    %204 = vmatpush1.msra.mxu0 %v77
    %205 = vmatprep.subr.mxu0 0.0
    %206 = vmatpush1.msra.mxu0 %v76
    %207 = vmatprep.subr.mxu0 0.0
    %208 = vmatpush1.msra.mxu0 %v75
    %209 = vmatprep.subr.mxu0 0.0
    %210 = vmatpush1.msra.mxu0 %v74
    %211 = vmatprep.subr.mxu0 0.0
    %212 = vmatpush1.msra.mxu0 %v73
    %213 = vmatprep.subr.mxu0 0.0
    %214 = vmatpush1.msra.mxu0 %v72
    %215 = vmatprep.subr.mxu0 0.0
    %216 = vmatpush1.msra.mxu0 %v71
    %217 = vmatprep.subr.mxu0 0.0
    %218 = vmatpush1.msra.mxu0 %v70
    %219 = vmatprep.subr.mxu0 0.0
    %220 = vmatpush1.msra.mxu0 %v69
    %221 = vmatprep.subr.mxu0 0.0
    %222 = vmatpush1.msra.mxu0 %v68
    %223 = vmatprep.subr.mxu0 0.0
    %224 = vmatpush2.msra.mxu0 %v99
    %225 = vmatprep.subr.mxu0 0.0
    %226 = vmatpush2.msra.mxu0 %v98
    %227 = vmatprep.subr.mxu0 0.0
    %228 = vmatpush2.msra.mxu0 %v97
    %229 = vmatprep.subr.mxu0 0.0
    %230 = vmatpush2.msra.mxu0 %v96
    %231 = vmatprep.subr.mxu0 0.0
    %232 = vmatpush2.msra.mxu0 %v95
    %233 = vmatprep.subr.mxu0 0.0
    %234 = vmatpush2.msra.mxu0 %v94
    %235 = vmatprep.subr.mxu0 0.0
    %236 = vmatpush2.msra.mxu0 %v93
    %237 = vmatprep.subr.mxu0 0.0
    %238 = vmatpush2.msra.mxu0 %v92
    %239 = vmatprep.subr.mxu0 0.0
    %240 = vmatpush2.msra.mxu0 %v91
    %241 = vmatprep.subr.mxu0 0.0
    %242 = vmatpush2.msra.mxu0 %v90
    %243 = vmatprep.subr.mxu0 0.0
    %244 = vmatpush2.msra.mxu0 %v89
    %245 = vmatprep.subr.mxu0 0.0
    %246 = vmatpush2.msra.mxu0 %v88
    %247 = vmatprep.subr.mxu0 0.0
    %248 = vmatpush2.msra.mxu0 %v87
    %249 = vmatprep.subr.mxu0 0.0
    %250 = vmatpush2.msra.mxu0 %v86
    %251 = vmatprep.subr.mxu0 0.0
    %252 = vmatpush2.msra.mxu0 %v85
    %253 = vmatprep.subr.mxu0 0.0
    %254 = vmatpush2.msra.mxu0 %v84
    %255 = vmatprep.mubr.f32.mxu0 %v29
    %256 = vmatmul.mubr.f32.gmra.mxu0 %v28
    %v257 = vpop.f32.mrf.mxu0
    %v258 = vadd.f32 %v183, %v257
    %v259 = vpop.f32.mrf.mxu0
    %260 = vmatprep.mubr.f32.mxu0 %v34
    %261 = vmatmul.mubr.f32.gmra.mxu0 %v33
    %v262 = vpop.f32.mrf.mxu0
    %v263 = vadd.f32 %v188, %v262
    %v264 = vpop.f32.mrf.mxu0
    %265 = vdwg.mxu0
    %266 = vmatprep.subr.mxu0 0.0
    %267 = vmatpush1.msra.mxu0 %v115
    %268 = vmatprep.subr.mxu0 0.0
    %269 = vmatpush1.msra.mxu0 %v114
    %270 = vmatprep.subr.mxu0 0.0
    %271 = vmatpush1.msra.mxu0 %v113
    %272 = vmatprep.subr.mxu0 0.0
    %273 = vmatpush1.msra.mxu0 %v112
    %274 = vmatprep.subr.mxu0 0.0
    %275 = vmatpush1.msra.mxu0 %v111
    %276 = vmatprep.subr.mxu0 0.0
    %277 = vmatpush1.msra.mxu0 %v110
    %278 = vmatprep.subr.mxu0 0.0
    %279 = vmatpush1.msra.mxu0 %v109
    %280 = vmatprep.subr.mxu0 0.0
    %281 = vmatpush1.msra.mxu0 %v108
    %282 = vmatprep.subr.mxu0 0.0
    %283 = vmatpush1.msra.mxu0 %v107
    %284 = vmatprep.subr.mxu0 0.0
    %285 = vmatpush1.msra.mxu0 %v106
    %286 = vmatprep.subr.mxu0 0.0
    %287 = vmatpush1.msra.mxu0 %v105
    %288 = vmatprep.subr.mxu0 0.0
    %289 = vmatpush1.msra.mxu0 %v104
    %290 = vmatprep.subr.mxu0 0.0
    %291 = vmatpush1.msra.mxu0 %v103
    %292 = vmatprep.subr.mxu0 0.0
    %293 = vmatpush1.msra.mxu0 %v102
    %294 = vmatprep.subr.mxu0 0.0
    %295 = vmatpush1.msra.mxu0 %v101
    %296 = vmatprep.subr.mxu0 0.0
    %297 = vmatpush1.msra.mxu0 %v100
    %298 = vmatprep.subr.mxu0 0.0
    %299 = vmatpush2.msra.mxu0 0.0
    %300 = vmatprep.subr.mxu0 0.0
    %301 = vmatpush2.msra.mxu0 0.0
    %302 = vmatprep.subr.mxu0 0.0
    %303 = vmatpush2.msra.mxu0 0.0
    %304 = vmatprep.subr.mxu0 0.0
    %305 = vmatpush2.msra.mxu0 0.0
    %306 = vmatprep.subr.mxu0 0.0
    %307 = vmatpush2.msra.mxu0 0.0
    %308 = vmatprep.subr.mxu0 0.0
    %309 = vmatpush2.msra.mxu0 0.0
    %310 = vmatprep.subr.mxu0 0.0
    %311 = vmatpush2.msra.mxu0 0.0
    %312 = vmatprep.subr.mxu0 0.0
    %313 = vmatpush2.msra.mxu0 0.0
    %314 = vmatprep.subr.mxu0 0.0
    %315 = vmatpush2.msra.mxu0 0.0
    %316 = vmatprep.subr.mxu0 0.0
    %317 = vmatpush2.msra.mxu0 0.0
    %318 = vmatprep.subr.mxu0 0.0
    %319 = vmatpush2.msra.mxu0 0.0
    %320 = vmatprep.subr.mxu0 0.0
    %321 = vmatpush2.msra.mxu0 0.0
    %322 = vmatprep.subr.mxu0 0.0
    %323 = vmatpush2.msra.mxu0 0.0
    %324 = vmatprep.subr.mxu0 0.0
    %325 = vmatpush2.msra.mxu0 0.0
    %326 = vmatprep.subr.mxu0 0.0
    %327 = vmatpush2.msra.mxu0 0.0
    %328 = vmatprep.subr.mxu0 0.0
    %329 = vmatpush2.msra.mxu0 0.0
    %330 = vmatprep.mubr.f32.mxu0 0.0
    %331 = vmatmul.mubr.f32.gmra.mxu0 %v30
    %v332 = vpop.f32.mrf.mxu0
    %v333 = vadd.f32 %v258, %v332
    %v334 = vpop.f32.mrf.mxu0
    %335 = vmatprep.mubr.f32.mxu0 0.0
    %336 = vmatmul.mubr.f32.gmra.mxu0 %v35
    %v337 = vpop.f32.mrf.mxu0
    %v338 = vadd.f32 %v263, %v337
    %v339 = vpop.f32.mrf.mxu0
    %340 = vdwg.mxu0
    %v341 = vadd.f32 %v24, %v333
    %v342 = vadd.f32 %v25, %v338
    %v343 = vtanh.pop %v341
    %v344 = vtanh.pop %v342
    %v345 = vld [vmem:[%s5] sm:$0xff]
    %v346 = vld [vmem:[%s5 + $0x8] sm:$0xff]
    %v347 = vld [vmem:[%s3] sm:$0xff]
    %v348 = vld [vmem:[%s3 + $0x8] sm:$0xff]
    %vm349 = vcmask 130048
    %v351 = vsel %vm349, %v347, 0
    %v354 = vsel %vm349, %v348, 0
    %356 = vmatprep.subr.mxu0 0.0
    %357 = vmatpush1.msra.mxu0 0.0
    %358 = vmatprep.subr.mxu0 0.0
    %359 = vmatpush1.msra.mxu0 0.0
    %360 = vmatprep.subr.mxu0 0.0
    %361 = vmatpush1.msra.mxu0 0.0
    %362 = vmatprep.subr.mxu0 0.0
    %363 = vmatpush1.msra.mxu0 0.0
    %364 = vmatprep.subr.mxu0 0.0
    %365 = vmatpush1.msra.mxu0 0.0
    %366 = vmatprep.subr.mxu0 0.0
    %367 = vmatpush1.msra.mxu0 0.0
    %368 = vmatprep.subr.mxu0 0.0
    %369 = vmatpush1.msra.mxu0 0.0
    %370 = vmatprep.subr.mxu0 0.0
    %371 = vmatpush1.msra.mxu0 0.0
    %372 = vmatprep.subr.mxu0 0.0
    %373 = vmatpush1.msra.mxu0 0.0
    %374 = vmatprep.subr.mxu0 0.0
    %375 = vmatpush1.msra.mxu0 0.0
    %376 = vmatprep.subr.mxu0 0.0
    %377 = vmatpush1.msra.mxu0 0.0
    %378 = vmatprep.subr.mxu0 0.0
    %379 = vmatpush1.msra.mxu0 0.0
    %380 = vmatprep.subr.mxu0 0.0
    %381 = vmatpush1.msra.mxu0 0.0
    %382 = vmatprep.subr.mxu0 0.0
    %383 = vmatpush1.msra.mxu0 0.0
    %384 = vmatprep.subr.mxu0 0.0
    %385 = vmatpush1.msra.mxu0 %v344
    %386 = vmatprep.subr.mxu0 0.0
    %387 = vmatpush1.msra.mxu0 %v343
    %388 = vmatprep.subr.mxu0 0.0
    %389 = vmatpush2.msra.mxu0 0.0
    %390 = vmatprep.subr.mxu0 0.0
    %391 = vmatpush2.msra.mxu0 0.0
    %392 = vmatprep.subr.mxu0 0.0
    %393 = vmatpush2.msra.mxu0 0.0
    %394 = vmatprep.subr.mxu0 0.0
    %395 = vmatpush2.msra.mxu0 0.0
    %396 = vmatprep.subr.mxu0 0.0
    %397 = vmatpush2.msra.mxu0 0.0
    %398 = vmatprep.subr.mxu0 0.0
    %399 = vmatpush2.msra.mxu0 0.0
    %400 = vmatprep.subr.mxu0 0.0
    %401 = vmatpush2.msra.mxu0 0.0
    %402 = vmatprep.subr.mxu0 0.0
    %403 = vmatpush2.msra.mxu0 0.0
    %404 = vmatprep.subr.mxu0 0.0
    %405 = vmatpush2.msra.mxu0 0.0
    %406 = vmatprep.subr.mxu0 0.0
    %407 = vmatpush2.msra.mxu0 0.0
    %408 = vmatprep.subr.mxu0 0.0
    %409 = vmatpush2.msra.mxu0 0.0
    %410 = vmatprep.subr.mxu0 0.0
    %411 = vmatpush2.msra.mxu0 0.0
    %412 = vmatprep.subr.mxu0 0.0
    %413 = vmatpush2.msra.mxu0 0.0
    %414 = vmatprep.subr.mxu0 0.0
    %415 = vmatpush2.msra.mxu0 0.0
    %416 = vmatprep.subr.mxu0 0.0
    %417 = vmatpush2.msra.mxu0 0.0
    %418 = vmatprep.subr.mxu0 0.0
    %419 = vmatpush2.msra.mxu0 0.0
    %420 = vmatprep.mubr.f32.mxu0 0.0
    %421 = vmatmul.mubr.f32.gmra.mxu0 %v351
    %v422 = vpop.f32.mrf.mxu0
    %v423 = vadd.f32 0.0, %v422
    %v424 = vpop.f32.mrf.mxu0
    %425 = vmatprep.mubr.f32.mxu0 0.0
    %426 = vmatmul.mubr.f32.gmra.mxu0 %v354
    %v427 = vpop.f32.mrf.mxu0
    %v428 = vadd.f32 0.0, %v427
    %v429 = vpop.f32.mrf.mxu0
    %430 = vdwg.mxu0
    %v431 = vld [vmem:[%s4] sm:$0xff]
    %v432 = vld [vmem:[%s4 + $0x8] sm:$0xff]
    %v433 = vld [vmem:[%s4 + $0x10] sm:$0xff]
    %v434 = vld [vmem:[%s4 + $0x18] sm:$0xff]
    %v435 = vld [vmem:[%s4 + $0x20] sm:$0xff]
    %v436 = vld [vmem:[%s4 + $0x28] sm:$0xff]
    %v437 = vld [vmem:[%s4 + $0x30] sm:$0xff]
    %v438 = vld [vmem:[%s4 + $0x38] sm:$0xff]
    %v439 = vld [vmem:[%s4 + $0x40] sm:$0xff]
    %v440 = vld [vmem:[%s4 + $0x48] sm:$0xff]
    %v441 = vld [vmem:[%s4 + $0x50] sm:$0xff]
    %v442 = vld [vmem:[%s4 + $0x58] sm:$0xff]
    %v443 = vld [vmem:[%s4 + $0x60] sm:$0xff]
    %v444 = vld [vmem:[%s4 + $0x68] sm:$0xff]
    %v445 = vld [vmem:[%s4 + $0x70] sm:$0xff]
    %v446 = vld [vmem:[%s4 + $0x78] sm:$0xff]
    %447 = vmatprep.subr.mxu0 0.0
    %448 = vmatpush1.msra.mxu0 %v446
    %449 = vmatprep.subr.mxu0 0.0
    %450 = vmatpush1.msra.mxu0 %v445
    %451 = vmatprep.subr.mxu0 0.0
    %452 = vmatpush1.msra.mxu0 %v444
    %453 = vmatprep.subr.mxu0 0.0
    %454 = vmatpush1.msra.mxu0 %v443
    %455 = vmatprep.subr.mxu0 0.0
    %456 = vmatpush1.msra.mxu0 %v442
    %457 = vmatprep.subr.mxu0 0.0
    %458 = vmatpush1.msra.mxu0 %v441
    %459 = vmatprep.subr.mxu0 0.0
    %460 = vmatpush1.msra.mxu0 %v440
    %461 = vmatprep.subr.mxu0 0.0
    %462 = vmatpush1.msra.mxu0 %v439
    %463 = vmatprep.subr.mxu0 0.0
    %464 = vmatpush1.msra.mxu0 %v438
    %465 = vmatprep.subr.mxu0 0.0
    %466 = vmatpush1.msra.mxu0 %v437
    %467 = vmatprep.subr.mxu0 0.0
    %468 = vmatpush1.msra.mxu0 %v436
    %469 = vmatprep.subr.mxu0 0.0
    %470 = vmatpush1.msra.mxu0 %v435
    %471 = vmatprep.subr.mxu0 0.0
    %472 = vmatpush1.msra.mxu0 %v434
    %473 = vmatprep.subr.mxu0 0.0
    %474 = vmatpush1.msra.mxu0 %v433
    %475 = vmatprep.subr.mxu0 0.0
    %476 = vmatpush1.msra.mxu0 %v432
    %477 = vmatprep.subr.mxu0 0.0
    %478 = vmatpush1.msra.mxu0 %v431
    %479 = vmatprep.subr.mxu0 0.0
    %480 = vmatpush2.msra.mxu0 0.0
    %481 = vmatprep.subr.mxu0 0.0
    %482 = vmatpush2.msra.mxu0 0.0
    %483 = vmatprep.subr.mxu0 0.0
    %484 = vmatpush2.msra.mxu0 0.0
    %485 = vmatprep.subr.mxu0 0.0
    %486 = vmatpush2.msra.mxu0 0.0
    %487 = vmatprep.subr.mxu0 0.0
    %488 = vmatpush2.msra.mxu0 0.0
    %489 = vmatprep.subr.mxu0 0.0
    %490 = vmatpush2.msra.mxu0 0.0
    %491 = vmatprep.subr.mxu0 0.0
    %492 = vmatpush2.msra.mxu0 0.0
    %493 = vmatprep.subr.mxu0 0.0
    %494 = vmatpush2.msra.mxu0 0.0
    %495 = vmatprep.subr.mxu0 0.0
    %496 = vmatpush2.msra.mxu0 0.0
    %497 = vmatprep.subr.mxu0 0.0
    %498 = vmatpush2.msra.mxu0 0.0
    %499 = vmatprep.subr.mxu0 0.0
    %500 = vmatpush2.msra.mxu0 0.0
    %501 = vmatprep.subr.mxu0 0.0
    %502 = vmatpush2.msra.mxu0 0.0
    %503 = vmatprep.subr.mxu0 0.0
    %504 = vmatpush2.msra.mxu0 0.0
    %505 = vmatprep.subr.mxu0 0.0
    %506 = vmatpush2.msra.mxu0 0.0
    %507 = vmatprep.subr.mxu0 0.0
    %508 = vmatpush2.msra.mxu0 0.0
    %509 = vmatprep.subr.mxu0 0.0
    %510 = vmatpush2.msra.mxu0 0.0
    %511 = vmatprep.mubr.f32.mxu0 0.0
    %512 = vmatmul.mubr.f32.gmra.mxu0 %v423
    %v513 = vpop.f32.mrf.mxu0
    %v514 = vadd.f32 0.0, %v513
    %v515 = vpop.f32.mrf.mxu0
    %516 = vmatprep.mubr.f32.mxu0 0.0
    %517 = vmatmul.mubr.f32.gmra.mxu0 %v428
    %v518 = vpop.f32.mrf.mxu0
    %v519 = vadd.f32 0.0, %v518
    %v520 = vpop.f32.mrf.mxu0
    %521 = vdwg.mxu0
    %v522 = vadd.f32 %v345, %v514
    %v523 = vadd.f32 %v346, %v519
    %s524 = scalar_lea.vmem %s3, 16
    %v525 = vld [vmem:[%s524] sm:$0xff]
    %v526 = vld [vmem:[%s524 + $0x8] sm:$0xff]
    %v528 = vsel %vm349, %v525, 0
    %v531 = vsel %vm349, %v526, 0
    %533 = vmatprep.subr.mxu0 0.0
    %534 = vmatpush1.msra.mxu0 0.0
    %535 = vmatprep.subr.mxu0 0.0
    %536 = vmatpush1.msra.mxu0 0.0
    %537 = vmatprep.subr.mxu0 0.0
    %538 = vmatpush1.msra.mxu0 0.0
    %539 = vmatprep.subr.mxu0 0.0
    %540 = vmatpush1.msra.mxu0 0.0
    %541 = vmatprep.subr.mxu0 0.0
    %542 = vmatpush1.msra.mxu0 0.0
    %543 = vmatprep.subr.mxu0 0.0
    %544 = vmatpush1.msra.mxu0 0.0
    %545 = vmatprep.subr.mxu0 0.0
    %546 = vmatpush1.msra.mxu0 0.0
    %547 = vmatprep.subr.mxu0 0.0
    %548 = vmatpush1.msra.mxu0 0.0
    %549 = vmatprep.subr.mxu0 0.0
    %550 = vmatpush1.msra.mxu0 0.0
    %551 = vmatprep.subr.mxu0 0.0
    %552 = vmatpush1.msra.mxu0 0.0
    %553 = vmatprep.subr.mxu0 0.0
    %554 = vmatpush1.msra.mxu0 0.0
    %555 = vmatprep.subr.mxu0 0.0
    %556 = vmatpush1.msra.mxu0 0.0
    %557 = vmatprep.subr.mxu0 0.0
    %558 = vmatpush1.msra.mxu0 0.0
    %559 = vmatprep.subr.mxu0 0.0
    %560 = vmatpush1.msra.mxu0 0.0
    %561 = vmatprep.subr.mxu0 0.0
    %562 = vmatpush1.msra.mxu0 %v344
    %563 = vmatprep.subr.mxu0 0.0
    %564 = vmatpush1.msra.mxu0 %v343
    %565 = vmatprep.subr.mxu0 0.0
    %566 = vmatpush2.msra.mxu0 0.0
    %567 = vmatprep.subr.mxu0 0.0
    %568 = vmatpush2.msra.mxu0 0.0
    %569 = vmatprep.subr.mxu0 0.0
    %570 = vmatpush2.msra.mxu0 0.0
    %571 = vmatprep.subr.mxu0 0.0
    %572 = vmatpush2.msra.mxu0 0.0
    %573 = vmatprep.subr.mxu0 0.0
    %574 = vmatpush2.msra.mxu0 0.0
    %575 = vmatprep.subr.mxu0 0.0
    %576 = vmatpush2.msra.mxu0 0.0
    %577 = vmatprep.subr.mxu0 0.0
    %578 = vmatpush2.msra.mxu0 0.0
    %579 = vmatprep.subr.mxu0 0.0
    %580 = vmatpush2.msra.mxu0 0.0
    %581 = vmatprep.subr.mxu0 0.0
    %582 = vmatpush2.msra.mxu0 0.0
    %583 = vmatprep.subr.mxu0 0.0
    %584 = vmatpush2.msra.mxu0 0.0
    %585 = vmatprep.subr.mxu0 0.0
    %586 = vmatpush2.msra.mxu0 0.0
    %587 = vmatprep.subr.mxu0 0.0
    %588 = vmatpush2.msra.mxu0 0.0
    %589 = vmatprep.subr.mxu0 0.0
    %590 = vmatpush2.msra.mxu0 0.0
    %591 = vmatprep.subr.mxu0 0.0
    %592 = vmatpush2.msra.mxu0 0.0
    %593 = vmatprep.subr.mxu0 0.0
    %594 = vmatpush2.msra.mxu0 0.0
    %595 = vmatprep.subr.mxu0 0.0
    %596 = vmatpush2.msra.mxu0 0.0
    %597 = vmatprep.mubr.f32.mxu0 0.0
    %598 = vmatmul.mubr.f32.gmra.mxu0 %v528
    %v599 = vpop.f32.mrf.mxu0
    %v600 = vadd.f32 0.0, %v599
    %v601 = vpop.f32.mrf.mxu0
    %602 = vmatprep.mubr.f32.mxu0 0.0
    %603 = vmatmul.mubr.f32.gmra.mxu0 %v531
    %v604 = vpop.f32.mrf.mxu0
    %v605 = vadd.f32 0.0, %v604
    %v606 = vpop.f32.mrf.mxu0
    %607 = vdwg.mxu0
    %s608 = scalar_lea.vmem %s4, 128
    %v609 = vld [vmem:[%s608] sm:$0xff]
    %v610 = vld [vmem:[%s608 + $0x8] sm:$0xff]
    %v611 = vld [vmem:[%s608 + $0x10] sm:$0xff]
    %v612 = vld [vmem:[%s608 + $0x18] sm:$0xff]
    %v613 = vld [vmem:[%s608 + $0x20] sm:$0xff]
    %v614 = vld [vmem:[%s608 + $0x28] sm:$0xff]
    %v615 = vld [vmem:[%s608 + $0x30] sm:$0xff]
    %v616 = vld [vmem:[%s608 + $0x38] sm:$0xff]
    %v617 = vld [vmem:[%s608 + $0x40] sm:$0xff]
    %v618 = vld [vmem:[%s608 + $0x48] sm:$0xff]
    %v619 = vld [vmem:[%s608 + $0x50] sm:$0xff]
    %v620 = vld [vmem:[%s608 + $0x58] sm:$0xff]
    %v621 = vld [vmem:[%s608 + $0x60] sm:$0xff]
    %v622 = vld [vmem:[%s608 + $0x68] sm:$0xff]
    %v623 = vld [vmem:[%s608 + $0x70] sm:$0xff]
    %v624 = vld [vmem:[%s608 + $0x78] sm:$0xff]
    %625 = vmatprep.subr.mxu0 0.0
    %626 = vmatpush1.msra.mxu0 %v624
    %627 = vmatprep.subr.mxu0 0.0
    %628 = vmatpush1.msra.mxu0 %v623
    %629 = vmatprep.subr.mxu0 0.0
    %630 = vmatpush1.msra.mxu0 %v622
    %631 = vmatprep.subr.mxu0 0.0
    %632 = vmatpush1.msra.mxu0 %v621
    %633 = vmatprep.subr.mxu0 0.0
    %634 = vmatpush1.msra.mxu0 %v620
    %635 = vmatprep.subr.mxu0 0.0
    %636 = vmatpush1.msra.mxu0 %v619
    %637 = vmatprep.subr.mxu0 0.0
    %638 = vmatpush1.msra.mxu0 %v618
    %639 = vmatprep.subr.mxu0 0.0
    %640 = vmatpush1.msra.mxu0 %v617
    %641 = vmatprep.subr.mxu0 0.0
    %642 = vmatpush1.msra.mxu0 %v616
    %643 = vmatprep.subr.mxu0 0.0
    %644 = vmatpush1.msra.mxu0 %v615
    %645 = vmatprep.subr.mxu0 0.0
    %646 = vmatpush1.msra.mxu0 %v614
    %647 = vmatprep.subr.mxu0 0.0
    %648 = vmatpush1.msra.mxu0 %v613
    %649 = vmatprep.subr.mxu0 0.0
    %650 = vmatpush1.msra.mxu0 %v612
    %651 = vmatprep.subr.mxu0 0.0
    %652 = vmatpush1.msra.mxu0 %v611
    %653 = vmatprep.subr.mxu0 0.0
    %654 = vmatpush1.msra.mxu0 %v610
    %655 = vmatprep.subr.mxu0 0.0
    %656 = vmatpush1.msra.mxu0 %v609
    %657 = vmatprep.subr.mxu0 0.0
    %658 = vmatpush2.msra.mxu0 0.0
    %659 = vmatprep.subr.mxu0 0.0
    %660 = vmatpush2.msra.mxu0 0.0
    %661 = vmatprep.subr.mxu0 0.0
    %662 = vmatpush2.msra.mxu0 0.0
    %663 = vmatprep.subr.mxu0 0.0
    %664 = vmatpush2.msra.mxu0 0.0
    %665 = vmatprep.subr.mxu0 0.0
    %666 = vmatpush2.msra.mxu0 0.0
    %667 = vmatprep.subr.mxu0 0.0
    %668 = vmatpush2.msra.mxu0 0.0
    %669 = vmatprep.subr.mxu0 0.0
    %670 = vmatpush2.msra.mxu0 0.0
    %671 = vmatprep.subr.mxu0 0.0
    %672 = vmatpush2.msra.mxu0 0.0
    %673 = vmatprep.subr.mxu0 0.0
    %674 = vmatpush2.msra.mxu0 0.0
    %675 = vmatprep.subr.mxu0 0.0
    %676 = vmatpush2.msra.mxu0 0.0
    %677 = vmatprep.subr.mxu0 0.0
    %678 = vmatpush2.msra.mxu0 0.0
    %679 = vmatprep.subr.mxu0 0.0
    %680 = vmatpush2.msra.mxu0 0.0
    %681 = vmatprep.subr.mxu0 0.0
    %682 = vmatpush2.msra.mxu0 0.0
    %683 = vmatprep.subr.mxu0 0.0
    %684 = vmatpush2.msra.mxu0 0.0
    %685 = vmatprep.subr.mxu0 0.0
    %686 = vmatpush2.msra.mxu0 0.0
    %687 = vmatprep.subr.mxu0 0.0
    %688 = vmatpush2.msra.mxu0 0.0
    %689 = vmatprep.mubr.f32.mxu0 0.0
    %690 = vmatmul.mubr.f32.gmra.mxu0 %v600
    %v691 = vpop.f32.mrf.mxu0
    %v692 = vadd.f32 0.0, %v691
    %v693 = vpop.f32.mrf.mxu0
    %694 = vmatprep.mubr.f32.mxu0 0.0
    %695 = vmatmul.mubr.f32.gmra.mxu0 %v605
    %v696 = vpop.f32.mrf.mxu0
    %v697 = vadd.f32 0.0, %v696
    %v698 = vpop.f32.mrf.mxu0
    %699 = vdwg.mxu0
    %v700 = vadd.f32 %v522, %v692
    %v701 = vadd.f32 %v523, %v697
    %s702 = scalar_lea.vmem %s3, 32
    %v703 = vld [vmem:[%s702] sm:$0xff]
    %v704 = vld [vmem:[%s702 + $0x8] sm:$0xff]
    %v706 = vsel %vm349, %v703, 0
    %v709 = vsel %vm349, %v704, 0
    %711 = vmatprep.subr.mxu0 0.0
    %712 = vmatpush1.msra.mxu0 0.0
    %713 = vmatprep.subr.mxu0 0.0
    %714 = vmatpush1.msra.mxu0 0.0
    %715 = vmatprep.subr.mxu0 0.0
    %716 = vmatpush1.msra.mxu0 0.0
    %717 = vmatprep.subr.mxu0 0.0
    %718 = vmatpush1.msra.mxu0 0.0
    %719 = vmatprep.subr.mxu0 0.0
    %720 = vmatpush1.msra.mxu0 0.0
    %721 = vmatprep.subr.mxu0 0.0
    %722 = vmatpush1.msra.mxu0 0.0
    %723 = vmatprep.subr.mxu0 0.0
    %724 = vmatpush1.msra.mxu0 0.0
    %725 = vmatprep.subr.mxu0 0.0
    %726 = vmatpush1.msra.mxu0 0.0
    %727 = vmatprep.subr.mxu0 0.0
    %728 = vmatpush1.msra.mxu0 0.0
    %729 = vmatprep.subr.mxu0 0.0
    %730 = vmatpush1.msra.mxu0 0.0
    %731 = vmatprep.subr.mxu0 0.0
    %732 = vmatpush1.msra.mxu0 0.0
    %733 = vmatprep.subr.mxu0 0.0
    %734 = vmatpush1.msra.mxu0 0.0
    %735 = vmatprep.subr.mxu0 0.0
    %736 = vmatpush1.msra.mxu0 0.0
    %737 = vmatprep.subr.mxu0 0.0
    %738 = vmatpush1.msra.mxu0 0.0
    %739 = vmatprep.subr.mxu0 0.0
    %740 = vmatpush1.msra.mxu0 %v344
    %741 = vmatprep.subr.mxu0 0.0
    %742 = vmatpush1.msra.mxu0 %v343
    %743 = vmatprep.subr.mxu0 0.0
    %744 = vmatpush2.msra.mxu0 0.0
    %745 = vmatprep.subr.mxu0 0.0
    %746 = vmatpush2.msra.mxu0 0.0
    %747 = vmatprep.subr.mxu0 0.0
    %748 = vmatpush2.msra.mxu0 0.0
    %749 = vmatprep.subr.mxu0 0.0
    %750 = vmatpush2.msra.mxu0 0.0
    %751 = vmatprep.subr.mxu0 0.0
    %752 = vmatpush2.msra.mxu0 0.0
    %753 = vmatprep.subr.mxu0 0.0
    %754 = vmatpush2.msra.mxu0 0.0
    %755 = vmatprep.subr.mxu0 0.0
    %756 = vmatpush2.msra.mxu0 0.0
    %757 = vmatprep.subr.mxu0 0.0
    %758 = vmatpush2.msra.mxu0 0.0
    %759 = vmatprep.subr.mxu0 0.0
    %760 = vmatpush2.msra.mxu0 0.0
    %761 = vmatprep.subr.mxu0 0.0
    %762 = vmatpush2.msra.mxu0 0.0
    %763 = vmatprep.subr.mxu0 0.0
    %764 = vmatpush2.msra.mxu0 0.0
    %765 = vmatprep.subr.mxu0 0.0
    %766 = vmatpush2.msra.mxu0 0.0
    %767 = vmatprep.subr.mxu0 0.0
    %768 = vmatpush2.msra.mxu0 0.0
    %769 = vmatprep.subr.mxu0 0.0
    %770 = vmatpush2.msra.mxu0 0.0
    %771 = vmatprep.subr.mxu0 0.0
    %772 = vmatpush2.msra.mxu0 0.0
    %773 = vmatprep.subr.mxu0 0.0
    %774 = vmatpush2.msra.mxu0 0.0
    %775 = vmatprep.mubr.f32.mxu0 0.0
    %776 = vmatmul.mubr.f32.gmra.mxu0 %v706
    %v777 = vpop.f32.mrf.mxu0
    %v778 = vadd.f32 0.0, %v777
    %v779 = vpop.f32.mrf.mxu0
    %780 = vmatprep.mubr.f32.mxu0 0.0
    %781 = vmatmul.mubr.f32.gmra.mxu0 %v709
    %v782 = vpop.f32.mrf.mxu0
    %v783 = vadd.f32 0.0, %v782
    %v784 = vpop.f32.mrf.mxu0
    %785 = vdwg.mxu0
    %s786 = scalar_lea.vmem %s4, 256
    %v787 = vld [vmem:[%s786] sm:$0xff]
    %v788 = vld [vmem:[%s786 + $0x8] sm:$0xff]
    %v789 = vld [vmem:[%s786 + $0x10] sm:$0xff]
    %v790 = vld [vmem:[%s786 + $0x18] sm:$0xff]
    %v791 = vld [vmem:[%s786 + $0x20] sm:$0xff]
    %v792 = vld [vmem:[%s786 + $0x28] sm:$0xff]
    %v793 = vld [vmem:[%s786 + $0x30] sm:$0xff]
    %v794 = vld [vmem:[%s786 + $0x38] sm:$0xff]
    %v795 = vld [vmem:[%s786 + $0x40] sm:$0xff]
    %v796 = vld [vmem:[%s786 + $0x48] sm:$0xff]
    %v797 = vld [vmem:[%s786 + $0x50] sm:$0xff]
    %v798 = vld [vmem:[%s786 + $0x58] sm:$0xff]
    %v799 = vld [vmem:[%s786 + $0x60] sm:$0xff]
    %v800 = vld [vmem:[%s786 + $0x68] sm:$0xff]
    %v801 = vld [vmem:[%s786 + $0x70] sm:$0xff]
    %v802 = vld [vmem:[%s786 + $0x78] sm:$0xff]
    %803 = vmatprep.subr.mxu0 0.0
    %804 = vmatpush1.msra.mxu0 %v802
    %805 = vmatprep.subr.mxu0 0.0
    %806 = vmatpush1.msra.mxu0 %v801
    %807 = vmatprep.subr.mxu0 0.0
    %808 = vmatpush1.msra.mxu0 %v800
    %809 = vmatprep.subr.mxu0 0.0
    %810 = vmatpush1.msra.mxu0 %v799
    %811 = vmatprep.subr.mxu0 0.0
    %812 = vmatpush1.msra.mxu0 %v798
    %813 = vmatprep.subr.mxu0 0.0
    %814 = vmatpush1.msra.mxu0 %v797
    %815 = vmatprep.subr.mxu0 0.0
    %816 = vmatpush1.msra.mxu0 %v796
    %817 = vmatprep.subr.mxu0 0.0
    %818 = vmatpush1.msra.mxu0 %v795
    %819 = vmatprep.subr.mxu0 0.0
    %820 = vmatpush1.msra.mxu0 %v794
    %821 = vmatprep.subr.mxu0 0.0
    %822 = vmatpush1.msra.mxu0 %v793
    %823 = vmatprep.subr.mxu0 0.0
    %824 = vmatpush1.msra.mxu0 %v792
    %825 = vmatprep.subr.mxu0 0.0
    %826 = vmatpush1.msra.mxu0 %v791
    %827 = vmatprep.subr.mxu0 0.0
    %828 = vmatpush1.msra.mxu0 %v790
    %829 = vmatprep.subr.mxu0 0.0
    %830 = vmatpush1.msra.mxu0 %v789
    %831 = vmatprep.subr.mxu0 0.0
    %832 = vmatpush1.msra.mxu0 %v788
    %833 = vmatprep.subr.mxu0 0.0
    %834 = vmatpush1.msra.mxu0 %v787
    %835 = vmatprep.subr.mxu0 0.0
    %836 = vmatpush2.msra.mxu0 0.0
    %837 = vmatprep.subr.mxu0 0.0
    %838 = vmatpush2.msra.mxu0 0.0
    %839 = vmatprep.subr.mxu0 0.0
    %840 = vmatpush2.msra.mxu0 0.0
    %841 = vmatprep.subr.mxu0 0.0
    %842 = vmatpush2.msra.mxu0 0.0
    %843 = vmatprep.subr.mxu0 0.0
    %844 = vmatpush2.msra.mxu0 0.0
    %845 = vmatprep.subr.mxu0 0.0
    %846 = vmatpush2.msra.mxu0 0.0
    %847 = vmatprep.subr.mxu0 0.0
    %848 = vmatpush2.msra.mxu0 0.0
    %849 = vmatprep.subr.mxu0 0.0
    %850 = vmatpush2.msra.mxu0 0.0
    %851 = vmatprep.subr.mxu0 0.0
    %852 = vmatpush2.msra.mxu0 0.0
    %853 = vmatprep.subr.mxu0 0.0
    %854 = vmatpush2.msra.mxu0 0.0
    %855 = vmatprep.subr.mxu0 0.0
    %856 = vmatpush2.msra.mxu0 0.0
    %857 = vmatprep.subr.mxu0 0.0
    %858 = vmatpush2.msra.mxu0 0.0
    %859 = vmatprep.subr.mxu0 0.0
    %860 = vmatpush2.msra.mxu0 0.0
    %861 = vmatprep.subr.mxu0 0.0
    %862 = vmatpush2.msra.mxu0 0.0
    %863 = vmatprep.subr.mxu0 0.0
    %864 = vmatpush2.msra.mxu0 0.0
    %865 = vmatprep.subr.mxu0 0.0
    %866 = vmatpush2.msra.mxu0 0.0
    %867 = vmatprep.mubr.f32.mxu0 0.0
    %868 = vmatmul.mubr.f32.gmra.mxu0 %v778
    %v869 = vpop.f32.mrf.mxu0
    %v870 = vadd.f32 0.0, %v869
    %v871 = vpop.f32.mrf.mxu0
    %872 = vmatprep.mubr.f32.mxu0 0.0
    %873 = vmatmul.mubr.f32.gmra.mxu0 %v783
    %v874 = vpop.f32.mrf.mxu0
    %v875 = vadd.f32 0.0, %v874
    %v876 = vpop.f32.mrf.mxu0
    %877 = vdwg.mxu0
    %v878 = vadd.f32 %v700, %v870
    %v879 = vadd.f32 %v701, %v875
    %s880 = scalar_lea.vmem %s3, 48
    %v881 = vld [vmem:[%s880] sm:$0xff]
    %v882 = vld [vmem:[%s880 + $0x8] sm:$0xff]
    %v884 = vsel %vm349, %v881, 0
    %v887 = vsel %vm349, %v882, 0
    %889 = vmatprep.subr.mxu0 0.0
    %890 = vmatpush1.msra.mxu0 0.0
    %891 = vmatprep.subr.mxu0 0.0
    %892 = vmatpush1.msra.mxu0 0.0
    %893 = vmatprep.subr.mxu0 0.0
    %894 = vmatpush1.msra.mxu0 0.0
    %895 = vmatprep.subr.mxu0 0.0
    %896 = vmatpush1.msra.mxu0 0.0
    %897 = vmatprep.subr.mxu0 0.0
    %898 = vmatpush1.msra.mxu0 0.0
    %899 = vmatprep.subr.mxu0 0.0
    %900 = vmatpush1.msra.mxu0 0.0
    %901 = vmatprep.subr.mxu0 0.0
    %902 = vmatpush1.msra.mxu0 0.0
    %903 = vmatprep.subr.mxu0 0.0
    %904 = vmatpush1.msra.mxu0 0.0
    %905 = vmatprep.subr.mxu0 0.0
    %906 = vmatpush1.msra.mxu0 0.0
    %907 = vmatprep.subr.mxu0 0.0
    %908 = vmatpush1.msra.mxu0 0.0
    %909 = vmatprep.subr.mxu0 0.0
    %910 = vmatpush1.msra.mxu0 0.0
    %911 = vmatprep.subr.mxu0 0.0
    %912 = vmatpush1.msra.mxu0 0.0
    %913 = vmatprep.subr.mxu0 0.0
    %914 = vmatpush1.msra.mxu0 0.0
    %915 = vmatprep.subr.mxu0 0.0
    %916 = vmatpush1.msra.mxu0 0.0
    %917 = vmatprep.subr.mxu0 0.0
    %918 = vmatpush1.msra.mxu0 %v344
    %919 = vmatprep.subr.mxu0 0.0
    %920 = vmatpush1.msra.mxu0 %v343
    %921 = vmatprep.subr.mxu0 0.0
    %922 = vmatpush2.msra.mxu0 0.0
    %923 = vmatprep.subr.mxu0 0.0
    %924 = vmatpush2.msra.mxu0 0.0
    %925 = vmatprep.subr.mxu0 0.0
    %926 = vmatpush2.msra.mxu0 0.0
    %927 = vmatprep.subr.mxu0 0.0
    %928 = vmatpush2.msra.mxu0 0.0
    %929 = vmatprep.subr.mxu0 0.0
    %930 = vmatpush2.msra.mxu0 0.0
    %931 = vmatprep.subr.mxu0 0.0
    %932 = vmatpush2.msra.mxu0 0.0
    %933 = vmatprep.subr.mxu0 0.0
    %934 = vmatpush2.msra.mxu0 0.0
    %935 = vmatprep.subr.mxu0 0.0
    %936 = vmatpush2.msra.mxu0 0.0
    %937 = vmatprep.subr.mxu0 0.0
    %938 = vmatpush2.msra.mxu0 0.0
    %939 = vmatprep.subr.mxu0 0.0
    %940 = vmatpush2.msra.mxu0 0.0
    %941 = vmatprep.subr.mxu0 0.0
    %942 = vmatpush2.msra.mxu0 0.0
    %943 = vmatprep.subr.mxu0 0.0
    %944 = vmatpush2.msra.mxu0 0.0
    %945 = vmatprep.subr.mxu0 0.0
    %946 = vmatpush2.msra.mxu0 0.0
    %947 = vmatprep.subr.mxu0 0.0
    %948 = vmatpush2.msra.mxu0 0.0
    %949 = vmatprep.subr.mxu0 0.0
    %950 = vmatpush2.msra.mxu0 0.0
    %951 = vmatprep.subr.mxu0 0.0
    %952 = vmatpush2.msra.mxu0 0.0
    %953 = vmatprep.mubr.f32.mxu0 0.0
    %954 = vmatmul.mubr.f32.gmra.mxu0 %v884
    %v955 = vpop.f32.mrf.mxu0
    %v956 = vadd.f32 0.0, %v955
    %v957 = vpop.f32.mrf.mxu0
    %958 = vmatprep.mubr.f32.mxu0 0.0
    %959 = vmatmul.mubr.f32.gmra.mxu0 %v887
    %v960 = vpop.f32.mrf.mxu0
    %v961 = vadd.f32 0.0, %v960
    %v962 = vpop.f32.mrf.mxu0
    %963 = vdwg.mxu0
    %s964 = scalar_lea.vmem %s4, 384
    %v965 = vld [vmem:[%s964] sm:$0xff]
    %v966 = vld [vmem:[%s964 + $0x8] sm:$0xff]
    %v967 = vld [vmem:[%s964 + $0x10] sm:$0xff]
    %v968 = vld [vmem:[%s964 + $0x18] sm:$0xff]
    %v969 = vld [vmem:[%s964 + $0x20] sm:$0xff]
    %v970 = vld [vmem:[%s964 + $0x28] sm:$0xff]
    %v971 = vld [vmem:[%s964 + $0x30] sm:$0xff]
    %v972 = vld [vmem:[%s964 + $0x38] sm:$0xff]
    %v973 = vld [vmem:[%s964 + $0x40] sm:$0xff]
    %v974 = vld [vmem:[%s964 + $0x48] sm:$0xff]
    %v975 = vld [vmem:[%s964 + $0x50] sm:$0xff]
    %v976 = vld [vmem:[%s964 + $0x58] sm:$0xff]
    %v977 = vld [vmem:[%s964 + $0x60] sm:$0xff]
    %v978 = vld [vmem:[%s964 + $0x68] sm:$0xff]
    %v979 = vld [vmem:[%s964 + $0x70] sm:$0xff]
    %v980 = vld [vmem:[%s964 + $0x78] sm:$0xff]
    %981 = vmatprep.subr.mxu0 0.0
    %982 = vmatpush1.msra.mxu0 %v980
    %983 = vmatprep.subr.mxu0 0.0
    %984 = vmatpush1.msra.mxu0 %v979
    %985 = vmatprep.subr.mxu0 0.0
    %986 = vmatpush1.msra.mxu0 %v978
    %987 = vmatprep.subr.mxu0 0.0
    %988 = vmatpush1.msra.mxu0 %v977
    %989 = vmatprep.subr.mxu0 0.0
    %990 = vmatpush1.msra.mxu0 %v976
    %991 = vmatprep.subr.mxu0 0.0
    %992 = vmatpush1.msra.mxu0 %v975
    %993 = vmatprep.subr.mxu0 0.0
    %994 = vmatpush1.msra.mxu0 %v974
    %995 = vmatprep.subr.mxu0 0.0
    %996 = vmatpush1.msra.mxu0 %v973
    %997 = vmatprep.subr.mxu0 0.0
    %998 = vmatpush1.msra.mxu0 %v972
    %999 = vmatprep.subr.mxu0 0.0
    %1000 = vmatpush1.msra.mxu0 %v971
    %1001 = vmatprep.subr.mxu0 0.0
    %1002 = vmatpush1.msra.mxu0 %v970
    %1003 = vmatprep.subr.mxu0 0.0
    %1004 = vmatpush1.msra.mxu0 %v969
    %1005 = vmatprep.subr.mxu0 0.0
    %1006 = vmatpush1.msra.mxu0 %v968
    %1007 = vmatprep.subr.mxu0 0.0
    %1008 = vmatpush1.msra.mxu0 %v967
    %1009 = vmatprep.subr.mxu0 0.0
    %1010 = vmatpush1.msra.mxu0 %v966
    %1011 = vmatprep.subr.mxu0 0.0
    %1012 = vmatpush1.msra.mxu0 %v965
    %1013 = vmatprep.subr.mxu0 0.0
    %1014 = vmatpush2.msra.mxu0 0.0
    %1015 = vmatprep.subr.mxu0 0.0
    %1016 = vmatpush2.msra.mxu0 0.0
    %1017 = vmatprep.subr.mxu0 0.0
    %1018 = vmatpush2.msra.mxu0 0.0
    %1019 = vmatprep.subr.mxu0 0.0
    %1020 = vmatpush2.msra.mxu0 0.0
    %1021 = vmatprep.subr.mxu0 0.0
    %1022 = vmatpush2.msra.mxu0 0.0
    %1023 = vmatprep.subr.mxu0 0.0
    %1024 = vmatpush2.msra.mxu0 0.0
    %1025 = vmatprep.subr.mxu0 0.0
    %1026 = vmatpush2.msra.mxu0 0.0
    %1027 = vmatprep.subr.mxu0 0.0
    %1028 = vmatpush2.msra.mxu0 0.0
    %1029 = vmatprep.subr.mxu0 0.0
    %1030 = vmatpush2.msra.mxu0 0.0
    %1031 = vmatprep.subr.mxu0 0.0
    %1032 = vmatpush2.msra.mxu0 0.0
    %1033 = vmatprep.subr.mxu0 0.0
    %1034 = vmatpush2.msra.mxu0 0.0
    %1035 = vmatprep.subr.mxu0 0.0
    %1036 = vmatpush2.msra.mxu0 0.0
    %1037 = vmatprep.subr.mxu0 0.0
    %1038 = vmatpush2.msra.mxu0 0.0
    %1039 = vmatprep.subr.mxu0 0.0
    %1040 = vmatpush2.msra.mxu0 0.0
    %1041 = vmatprep.subr.mxu0 0.0
    %1042 = vmatpush2.msra.mxu0 0.0
    %1043 = vmatprep.subr.mxu0 0.0
    %1044 = vmatpush2.msra.mxu0 0.0
    %1045 = vmatprep.mubr.f32.mxu0 0.0
    %1046 = vmatmul.mubr.f32.gmra.mxu0 %v956
    %v1047 = vpop.f32.mrf.mxu0
    %v1048 = vadd.f32 0.0, %v1047
    %v1049 = vpop.f32.mrf.mxu0
    %1050 = vmatprep.mubr.f32.mxu0 0.0
    %1051 = vmatmul.mubr.f32.gmra.mxu0 %v961
    %v1052 = vpop.f32.mrf.mxu0
    %v1053 = vadd.f32 0.0, %v1052
    %v1054 = vpop.f32.mrf.mxu0
    %1055 = vdwg.mxu0
    %v1056 = vadd.f32 %v878, %v1048
    %v1057 = vadd.f32 %v879, %v1053
    %s1058 = scalar_lea.vmem %s3, 64
    %v1059 = vld [vmem:[%s1058] sm:$0xff]
    %v1060 = vld [vmem:[%s1058 + $0x8] sm:$0xff]
    %v1062 = vsel %vm349, %v1059, 0
    %v1065 = vsel %vm349, %v1060, 0
    %1067 = vmatprep.subr.mxu0 0.0
    %1068 = vmatpush1.msra.mxu0 0.0
    %1069 = vmatprep.subr.mxu0 0.0
    %1070 = vmatpush1.msra.mxu0 0.0
    %1071 = vmatprep.subr.mxu0 0.0
    %1072 = vmatpush1.msra.mxu0 0.0
    %1073 = vmatprep.subr.mxu0 0.0
    %1074 = vmatpush1.msra.mxu0 0.0
    %1075 = vmatprep.subr.mxu0 0.0
    %1076 = vmatpush1.msra.mxu0 0.0
    %1077 = vmatprep.subr.mxu0 0.0
    %1078 = vmatpush1.msra.mxu0 0.0
    %1079 = vmatprep.subr.mxu0 0.0
    %1080 = vmatpush1.msra.mxu0 0.0
    %1081 = vmatprep.subr.mxu0 0.0
    %1082 = vmatpush1.msra.mxu0 0.0
    %1083 = vmatprep.subr.mxu0 0.0
    %1084 = vmatpush1.msra.mxu0 0.0
    %1085 = vmatprep.subr.mxu0 0.0
    %1086 = vmatpush1.msra.mxu0 0.0
    %1087 = vmatprep.subr.mxu0 0.0
    %1088 = vmatpush1.msra.mxu0 0.0
    %1089 = vmatprep.subr.mxu0 0.0
    %1090 = vmatpush1.msra.mxu0 0.0
    %1091 = vmatprep.subr.mxu0 0.0
    %1092 = vmatpush1.msra.mxu0 0.0
    %1093 = vmatprep.subr.mxu0 0.0
    %1094 = vmatpush1.msra.mxu0 0.0
    %1095 = vmatprep.subr.mxu0 0.0
    %1096 = vmatpush1.msra.mxu0 %v344
    %1097 = vmatprep.subr.mxu0 0.0
    %1098 = vmatpush1.msra.mxu0 %v343
    %1099 = vmatprep.subr.mxu0 0.0
    %1100 = vmatpush2.msra.mxu0 0.0
    %1101 = vmatprep.subr.mxu0 0.0
    %1102 = vmatpush2.msra.mxu0 0.0
    %1103 = vmatprep.subr.mxu0 0.0
    %1104 = vmatpush2.msra.mxu0 0.0
    %1105 = vmatprep.subr.mxu0 0.0
    %1106 = vmatpush2.msra.mxu0 0.0
    %1107 = vmatprep.subr.mxu0 0.0
    %1108 = vmatpush2.msra.mxu0 0.0
    %1109 = vmatprep.subr.mxu0 0.0
    %1110 = vmatpush2.msra.mxu0 0.0
    %1111 = vmatprep.subr.mxu0 0.0
    %1112 = vmatpush2.msra.mxu0 0.0
    %1113 = vmatprep.subr.mxu0 0.0
    %1114 = vmatpush2.msra.mxu0 0.0
    %1115 = vmatprep.subr.mxu0 0.0
    %1116 = vmatpush2.msra.mxu0 0.0
    %1117 = vmatprep.subr.mxu0 0.0
    %1118 = vmatpush2.msra.mxu0 0.0
    %1119 = vmatprep.subr.mxu0 0.0
    %1120 = vmatpush2.msra.mxu0 0.0
    %1121 = vmatprep.subr.mxu0 0.0
    %1122 = vmatpush2.msra.mxu0 0.0
    %1123 = vmatprep.subr.mxu0 0.0
    %1124 = vmatpush2.msra.mxu0 0.0
    %1125 = vmatprep.subr.mxu0 0.0
    %1126 = vmatpush2.msra.mxu0 0.0
    %1127 = vmatprep.subr.mxu0 0.0
    %1128 = vmatpush2.msra.mxu0 0.0
    %1129 = vmatprep.subr.mxu0 0.0
    %1130 = vmatpush2.msra.mxu0 0.0
    %1131 = vmatprep.mubr.f32.mxu0 0.0
    %1132 = vmatmul.mubr.f32.gmra.mxu0 %v1062
    %v1133 = vpop.f32.mrf.mxu0
    %v1134 = vadd.f32 0.0, %v1133
    %v1135 = vpop.f32.mrf.mxu0
    %1136 = vmatprep.mubr.f32.mxu0 0.0
    %1137 = vmatmul.mubr.f32.gmra.mxu0 %v1065
    %v1138 = vpop.f32.mrf.mxu0
    %v1139 = vadd.f32 0.0, %v1138
    %v1140 = vpop.f32.mrf.mxu0
    %1141 = vdwg.mxu0
    %s1142 = scalar_lea.vmem %s4, 512
    %v1143 = vld [vmem:[%s1142] sm:$0xff]
    %v1144 = vld [vmem:[%s1142 + $0x8] sm:$0xff]
    %v1145 = vld [vmem:[%s1142 + $0x10] sm:$0xff]
    %v1146 = vld [vmem:[%s1142 + $0x18] sm:$0xff]
    %v1147 = vld [vmem:[%s1142 + $0x20] sm:$0xff]
    %v1148 = vld [vmem:[%s1142 + $0x28] sm:$0xff]
    %v1149 = vld [vmem:[%s1142 + $0x30] sm:$0xff]
    %v1150 = vld [vmem:[%s1142 + $0x38] sm:$0xff]
    %v1151 = vld [vmem:[%s1142 + $0x40] sm:$0xff]
    %v1152 = vld [vmem:[%s1142 + $0x48] sm:$0xff]
    %v1153 = vld [vmem:[%s1142 + $0x50] sm:$0xff]
    %v1154 = vld [vmem:[%s1142 + $0x58] sm:$0xff]
    %v1155 = vld [vmem:[%s1142 + $0x60] sm:$0xff]
    %v1156 = vld [vmem:[%s1142 + $0x68] sm:$0xff]
    %v1157 = vld [vmem:[%s1142 + $0x70] sm:$0xff]
    %v1158 = vld [vmem:[%s1142 + $0x78] sm:$0xff]
    %1159 = vmatprep.subr.mxu0 0.0
    %1160 = vmatpush1.msra.mxu0 %v1158
    %1161 = vmatprep.subr.mxu0 0.0
    %1162 = vmatpush1.msra.mxu0 %v1157
    %1163 = vmatprep.subr.mxu0 0.0
    %1164 = vmatpush1.msra.mxu0 %v1156
    %1165 = vmatprep.subr.mxu0 0.0
    %1166 = vmatpush1.msra.mxu0 %v1155
    %1167 = vmatprep.subr.mxu0 0.0
    %1168 = vmatpush1.msra.mxu0 %v1154
    %1169 = vmatprep.subr.mxu0 0.0
    %1170 = vmatpush1.msra.mxu0 %v1153
    %1171 = vmatprep.subr.mxu0 0.0
    %1172 = vmatpush1.msra.mxu0 %v1152
    %1173 = vmatprep.subr.mxu0 0.0
    %1174 = vmatpush1.msra.mxu0 %v1151
    %1175 = vmatprep.subr.mxu0 0.0
    %1176 = vmatpush1.msra.mxu0 %v1150
    %1177 = vmatprep.subr.mxu0 0.0
    %1178 = vmatpush1.msra.mxu0 %v1149
    %1179 = vmatprep.subr.mxu0 0.0
    %1180 = vmatpush1.msra.mxu0 %v1148
    %1181 = vmatprep.subr.mxu0 0.0
    %1182 = vmatpush1.msra.mxu0 %v1147
    %1183 = vmatprep.subr.mxu0 0.0
    %1184 = vmatpush1.msra.mxu0 %v1146
    %1185 = vmatprep.subr.mxu0 0.0
    %1186 = vmatpush1.msra.mxu0 %v1145
    %1187 = vmatprep.subr.mxu0 0.0
    %1188 = vmatpush1.msra.mxu0 %v1144
    %1189 = vmatprep.subr.mxu0 0.0
    %1190 = vmatpush1.msra.mxu0 %v1143
    %1191 = vmatprep.subr.mxu0 0.0
    %1192 = vmatpush2.msra.mxu0 0.0
    %1193 = vmatprep.subr.mxu0 0.0
    %1194 = vmatpush2.msra.mxu0 0.0
    %1195 = vmatprep.subr.mxu0 0.0
    %1196 = vmatpush2.msra.mxu0 0.0
    %1197 = vmatprep.subr.mxu0 0.0
    %1198 = vmatpush2.msra.mxu0 0.0
    %1199 = vmatprep.subr.mxu0 0.0
    %1200 = vmatpush2.msra.mxu0 0.0
    %1201 = vmatprep.subr.mxu0 0.0
    %1202 = vmatpush2.msra.mxu0 0.0
    %1203 = vmatprep.subr.mxu0 0.0
    %1204 = vmatpush2.msra.mxu0 0.0
    %1205 = vmatprep.subr.mxu0 0.0
    %1206 = vmatpush2.msra.mxu0 0.0
    %1207 = vmatprep.subr.mxu0 0.0
    %1208 = vmatpush2.msra.mxu0 0.0
    %1209 = vmatprep.subr.mxu0 0.0
    %1210 = vmatpush2.msra.mxu0 0.0
    %1211 = vmatprep.subr.mxu0 0.0
    %1212 = vmatpush2.msra.mxu0 0.0
    %1213 = vmatprep.subr.mxu0 0.0
    %1214 = vmatpush2.msra.mxu0 0.0
    %1215 = vmatprep.subr.mxu0 0.0
    %1216 = vmatpush2.msra.mxu0 0.0
    %1217 = vmatprep.subr.mxu0 0.0
    %1218 = vmatpush2.msra.mxu0 0.0
    %1219 = vmatprep.subr.mxu0 0.0
    %1220 = vmatpush2.msra.mxu0 0.0
    %1221 = vmatprep.subr.mxu0 0.0
    %1222 = vmatpush2.msra.mxu0 0.0
    %1223 = vmatprep.mubr.f32.mxu0 0.0
    %1224 = vmatmul.mubr.f32.gmra.mxu0 %v1134
    %v1225 = vpop.f32.mrf.mxu0
    %v1226 = vadd.f32 0.0, %v1225
    %v1227 = vpop.f32.mrf.mxu0
    %1228 = vmatprep.mubr.f32.mxu0 0.0
    %1229 = vmatmul.mubr.f32.gmra.mxu0 %v1139
    %v1230 = vpop.f32.mrf.mxu0
    %v1231 = vadd.f32 0.0, %v1230
    %v1232 = vpop.f32.mrf.mxu0
    %1233 = vdwg.mxu0
    %v1234 = vadd.f32 %v1056, %v1226
    %v1235 = vadd.f32 %v1057, %v1231
    %v1236 = vtanh.pop %v1234
    %v1237 = vtanh.pop %v1235
    %1238 = vst [vmem:[#allocation2] sm:$0xff] %v1236
    %1239 = vst [vmem:[#allocation2 + $0x8] sm:$0xff] %v1237
    // Predicated region
    $region26: #{fam_gnn_noatte.1} parent=1 // pred_check
      _
    $region27: #{fam_gnn_noatte.1} parent=1 // pred_check_branch
      %1241 = sbr.rel (0) target = $region29
    $region28: #{fam_gnn_noatte.1} parent=1 // pred_region
      %s1243 = ssub.s32 256, 256
      %1244 = vsyncadd [#allocation3], %s1243
      %s1245 = sshll.u32 [#allocation2], 4
      %s1246 = int_to_ptr.vmem [resolvable:$true] %s1245
      %1251 = dma.vmem_to_hbm [thread:$0]  %s1246, 256, %s6, [#allocation3], 128, 128, 8
    $region29: #{fam_gnn_noatte.1} parent=1 // pred_fallthru
      _
    // Predicated region
    $region30: #{fam_gnn_noatte.1} parent=1 // pred_check
      _
    $region31: #{fam_gnn_noatte.1} parent=1 // pred_check_branch
      %1253 = sbr.rel (0) target = $region33
    $region32: #{fam_gnn_noatte.1} parent=1 // pred_region
      %1254 = dma.done [#allocation3], 256
    $region33: #{fam_gnn_noatte.1} parent=1 // pred_fallthru
      _
    %1255 = vsyncpa [#allocation3], 1

</llo_original>
